<compile_context>
chip_gen: v7x
topology: tpu7x:2x2x1
jax: 0.10.0
libtpu: 0.0.40
codegen_flags: <defaults>
</compile_context>

<pallas_src>
import math

import jax
import jax.numpy as jnp
from jax.experimental import pallas as pl
from jax.experimental.pallas import tpu as pltpu


_NEG_INF = -1e30
_SUB = 16  # batch-dim granularity (bf16 packs 16 rows per sublane tile)


def _round_up(x, m):
    return ((x + m - 1) // m) * m


# ---------------------------------------------------------------------------
# Kernel
# ---------------------------------------------------------------------------
def _gst_kernel(ref_ref, ws_ref, vbd_ref, wo_ref, g_ref, b_ref, out_ref):
    """One batch block of the GST forward.

    ref_ref : (TB, ref_dim)        bf16  reference embeddings
    ws_ref  : (ref_dim, L)         bf16  fused  wq^T @ K_blockdiag  (scale folded in)
    vbd_ref : (L, n_feat)          bf16  block-diagonal V
    wo_ref  : (n_feat, n_feat)     bf16  output projection (wo^T)
    g_ref   : (L, L)               f32   block-diag ones -> per-head softmax group sums
    b_ref   : (2, max(L, n_feat))  f32   row0[:L] = score bias (bq folded, -1e30 on pad
                                          lanes); row1[:n_feat] = bo
    out_ref : (TB, n_feat)         f32
    L = n_head * T_pad (=128): head h owns lanes [h*T_pad, (h+1)*T_pad).
    """
    cdt = ws_ref.dtype
    L = ws_ref.shape[1]
    n_feat = wo_ref.shape[1]

    score_bias = b_ref[0:1, 0:L]            # (1, L)       f32
    bo = b_ref[1:2, 0:n_feat]               # (1, n_feat)  f32

    # Q-projection and per-head Q·K^T fused into ONE lane-dense MXU pass.
    scores = jnp.dot(ref_ref[...], ws_ref[...],
                     preferred_element_type=jnp.float32) + score_bias     # (TB, L) f32

    # Per-head softmax over block-diagonal lane groups.
    m = jnp.max(scores, axis=-1, keepdims=True)   # row-global max; pad lanes are -1e30
    e = jnp.exp(scores - m)                       # pad lanes -> exactly 0
    denom = jnp.dot(e, g_ref[...],
                    preferred_element_type=jnp.float32)   # each lane sees its group sum
    denom = jnp.maximum(denom, 1e-30)             # NaN guard for pathological underflow
    p = e * pl.reciprocal(denom, approx=True)     # EUP slot

    # Context (block-diagonal V) and merged output projection.
    ctx = jnp.dot(p.astype(cdt), vbd_ref[...], preferred_element_type=jnp.float32)
    out = jnp.dot(ctx.astype(cdt), wo_ref[...], preferred_element_type=jnp.float32) + bo
    out_ref[...] = out.astype(out_ref.dtype)


# ---------------------------------------------------------------------------
# One-time parameter preparation (everything that does not depend on ref_embs)
# ---------------------------------------------------------------------------
def prepare_gst_params(params, *, gst_heads, param_dtype=jnp.bfloat16):
    """Precompute the block-diagonal / fused operands.  Call once, reuse."""
    wq, wk, wv, wo = params["wq"], params["wk"], params["wv"], params["wo"]
    bq, bk, bv, bo = params["bq"], params["bk"], params["bv"], params["bo"]
    n_feat, ref_dim = wq.shape
    H = gst_heads
    d_k = n_feat // H
    T = params["gst_embs"].shape[0]

    # Token K/V (parameter-only path of the module).
    gst = jnp.tanh(params["gst_embs"].astype(jnp.float32))           # (T, kv_dim)
    k = gst @ wk.T.astype(jnp.float32) + bk.astype(jnp.float32)      # (T, n_feat)
    v = gst @ wv.T.astype(jnp.float32) + bv.astype(jnp.float32)      # (T, n_feat)

    # Lane geometry: pad tokens so all heads tile the 128-lane dimension densely.
    T_pad = _round_up(T, 8)
    L = _round_up(H * T_pad, 128)
    assert L % H == 0, "head count must divide the padded lane width"
    T_pad = L // H

    scale = 1.0 / math.sqrt(d_k)

    # Block-diagonal K (scale folded in) and V.
    k_bd = jnp.zeros((n_feat, L), jnp.float32)
    v_bd = jnp.zeros((L, n_feat), jnp.float32)
    for h in range(H):
        kh = k[:, h * d_k:(h + 1) * d_k] * scale                     # (T, d_k)
        vh = v[:, h * d_k:(h + 1) * d_k]                             # (T, d_k)
        k_bd = k_bd.at[h * d_k:(h + 1) * d_k, h * T_pad:h * T_pad + T].set(kh.T)
        v_bd = v_bd.at[h * T_pad:h * T_pad + T, h * d_k:(h + 1) * d_k].set(vh)

    # Fuse the Q projection into the key matmul:  scores = ref @ w_score + bias.
    w_score = wq.T.astype(jnp.float32) @ k_bd                        # (ref_dim, L)
    lane = jnp.arange(L)
    pad_lane = (lane % T_pad) >= T
    score_bias = bq.astype(jnp.float32) @ k_bd                       # (L,)  (bq folded in)
    score_bias = jnp.where(pad_lane, _NEG_INF, score_bias)

    # Block-diagonal ones: per-head softmax group sums via one MXU pass.
    gsum = (lane[:, None] // T_pad == lane[None, :] // T_pad).astype(jnp.float32)

    # Packed f32 bias rows.
    bias_w = max(n_feat, L)
    b_packed = jnp.zeros((2, bias_w), jnp.float32)
    b_packed = b_packed.at[0, :L].set(score_bias)
    b_packed = b_packed.at[1, :n_feat].set(bo.astype(jnp.float32))

    return dict(
        w_score=w_score.astype(param_dtype),     # (ref_dim, L)   bf16
        v_bd=v_bd.astype(param_dtype),           # (L, n_feat)    bf16
        wo_t=wo.T.astype(param_dtype),           # (n_feat, n_feat) bf16
        gsum=gsum,                               # (L, L)         f32
        b=b_packed,                              # (2, bias_w)    f32
        L=L, T_pad=T_pad, T=T, n_head=H, d_k=d_k, n_feat=n_feat, ref_dim=ref_dim)


# ---------------------------------------------------------------------------
# Wrapper
# ---------------------------------------------------------------------------
def style_token_layer(ref_embs, prep, *, batch_block=512,
                      out_dtype=jnp.float32, compute_dtype=jnp.bfloat16):
    """ref_embs: (B, ref_embed_dim) -> (B, gst_token_dim)."""
    B, ref_dim = ref_embs.shape
    assert ref_dim == prep["ref_dim"]
    n_feat = prep["n_feat"]
    batch_block = _round_up(batch_block, _SUB)

    # bf16 input halves the batch-proportional HBM read (MXU operands are bf16 anyway).
    x = ref_embs.astype(compute_dtype)

    # Pad batch to a multiple of 16 so every block is full (no garbage tail rows),
    # and split a single-block grid in two so v7x's second TensorCore gets work.
    B_eff = _round_up(max(B, _SUB), _SUB)
    tb = min(batch_block, B_eff)
    if B_eff >= 2 * _SUB and tb == B_eff and B_eff >= 32:
        tb = _round_up(pl.cdiv(B_eff, 2), _SUB)
    B_pad = _round_up(B_eff, tb)
    if B_pad != B:
        x = jnp.pad(x, ((0, B_pad - B), (0, 0)))

    grid = (B_pad // tb,)
    out = pl.pallas_call(
        _gst_kernel,
        out_shape=jax.ShapeDtypeStruct((B_pad, n_feat), out_dtype),
        grid=grid,
        in_specs=[
            pl.BlockSpec((tb, ref_dim), lambda i: (i, 0)),
            # Constant index_maps -> weights/K/V stay resident across grid steps.
            pl.BlockSpec(prep["w_score"].shape, lambda i: (0, 0)),
            pl.BlockSpec(prep["v_bd"].shape, lambda i: (0, 0)),
            pl.BlockSpec(prep["wo_t"].shape, lambda i: (0, 0)),
            pl.BlockSpec(prep["gsum"].shape, lambda i: (0, 0)),
            pl.BlockSpec(prep["b"].shape, lambda i: (0, 0)),
        ],
        out_specs=pl.BlockSpec((tb, n_feat), lambda i: (i, 0)),
        compiler_params=pltpu.CompilerParams(
            dimension_semantics=("parallel",)),
    )(x, prep["w_score"], prep["v_bd"], prep["wo_t"], prep["gsum"], prep["b"])
    return out[:B]


# ---------------------------------------------------------------------------
# References for verification.
# ---------------------------------------------------------------------------
def _reference_prepared(ref_embs, prep):
    """Pure-JAX mirror of the kernel math (same bf16 operands, exact reciprocal)."""
    cdt = prep["w_score"].dtype
    L, n_feat = prep["L"], prep["n_feat"]
    x = ref_embs.astype(cdt)
    scores = jnp.dot(x, prep["w_score"], preferred_element_type=jnp.float32) \
        + prep["b"][0:1, :L]
    m = jnp.max(scores, axis=-1, keepdims=True)
    e = jnp.exp(scores - m)
    denom = jnp.maximum(jnp.dot(e, prep["gsum"], preferred_element_type=jnp.float32), 1e-30)
    p = e / denom
    ctx = jnp.dot(p.astype(cdt), prep["v_bd"], preferred_element_type=jnp.float32)
    return jnp.dot(ctx.astype(cdt), prep["wo_t"],
                   preferred_element_type=jnp.float32) + prep["b"][1:2, :n_feat]


def _reference_f32(ref_embs, params, *, gst_heads):
    """Plain-JAX f32 reference mirroring the PyTorch module (dropout_rate=0, mask=None)."""
    gst = jnp.tanh(params["gst_embs"])                         # (T, kv_dim)
    n_feat = params["wq"].shape[0]
    d_k = n_feat // gst_heads
    B = ref_embs.shape[0]
    T = gst.shape[0]

    q = ref_embs @ params["wq"].T + params["bq"]               # (B, n_feat)
    k = gst @ params["wk"].T + params["bk"]                    # (T, n_feat)
    v = gst @ params["wv"].T + params["bv"]                    # (T, n_feat)

    q = q.reshape(B, 1, gst_heads, d_k).transpose(0, 2, 1, 3)  # (B, H, 1, d_k)
    k = jnp.broadcast_to(k.reshape(1, T, gst_heads, d_k),
                         (B, T, gst_heads, d_k)).transpose(0, 2, 1, 3)
    v = jnp.broadcast_to(v.reshape(1, T, gst_heads, d_k),
                         (B, T, gst_heads, d_k)).transpose(0, 2, 1, 3)

    scores = jnp.einsum("bhqd,bhkd->bhqk", q, k) / math.sqrt(d_k)
    attn = jax.nn.softmax(scores, axis=-1)
    x = jnp.einsum("bhqk,bhkd->bhqd", attn, v)                 # (B, H, 1, d_k)
    x = x.transpose(0, 2, 1, 3).reshape(B, 1, n_feat)
    out = x @ params["wo"].T + params["bo"]
    return out[:, 0, :]


def init_params(key, *, ref_embed_dim, gst_tokens, gst_token_dim, gst_heads):
    kv_dim = gst_token_dim // gst_heads
    n_feat = gst_token_dim
    ks = jax.random.split(key, 9)
    s = 0.1  # small deterministic init scale
    return {
        "gst_embs": jax.random.normal(ks[0], (gst_tokens, kv_dim), jnp.float32),
        "wq": s * jax.random.normal(ks[1], (n_feat, ref_embed_dim), jnp.float32),
        "bq": s * jax.random.normal(ks[2], (n_feat,), jnp.float32),
        "wk": s * jax.random.normal(ks[3], (n_feat, kv_dim), jnp.float32),
        "bk": s * jax.random.normal(ks[4], (n_feat,), jnp.float32),
        "wv": s * jax.random.normal(ks[5], (n_feat, kv_dim), jnp.float32),
        "bv": s * jax.random.normal(ks[6], (n_feat,), jnp.float32),
        "wo": s * jax.random.normal(ks[7], (n_feat, n_feat), jnp.float32),
        "bo": s * jax.random.normal(ks[8], (n_feat,), jnp.float32),
    }


if __name__ == "__main__":
    # Module defaults, small batch.
    ref_embed_dim = 128
    gst_tokens = 10
    gst_token_dim = 256
    gst_heads = 4

    key = jax.random.PRNGKey(0)
    k_param, k_in1, k_in2 = jax.random.split(key, 3)
    params = init_params(k_param,
                         ref_embed_dim=ref_embed_dim,
                         gst_tokens=gst_tokens,
                         gst_token_dim=gst_token_dim,
                         gst_heads=gst_heads)

    # One-time parameter prep (tanh + K/V projections + block-diagonal packing).
    prep = prepare_gst_params(params, gst_heads=gst_heads, param_dtype=jnp.bfloat16)

    # --- B=2 (module-default small batch; wrapper pads to 16 rows) -------------
    ref_embs = jax.random.normal(k_in1, (2, ref_embed_dim), jnp.float32)
    out = jax.block_until_ready(style_token_layer(ref_embs, prep))
    assert out.shape == (2, gst_token_dim)

    tight = _reference_prepared(ref_embs, prep)
    err_tight = float(jnp.max(jnp.abs(out - tight)))
    # 5e-3 tolerance covers the approx-reciprocal (~1e-3 rel) + bf16 p-cast noise.
    assert jnp.allclose(out, tight, rtol=5e-3, atol=5e-3), f"tight max abs err = {err_tight}"

    full = _reference_f32(ref_embs, params, gst_heads=gst_heads)
    err_full = float(jnp.max(jnp.abs(out - full)))
    assert jnp.allclose(out, full, rtol=5e-2, atol=5e-2), f"f32 max abs err = {err_full}"

    # --- B=40 (exercises batch padding + the >=2-program parallel grid) --------
    ref_embs2 = jax.random.normal(k_in2, (40, ref_embed_dim), jnp.float32)
    out2 = jax.block_until_ready(style_token_layer(ref_embs2, prep))
    assert out2.shape == (40, gst_token_dim)
    tight2 = _reference_prepared(ref_embs2, prep)
    assert jnp.allclose(out2, tight2, rtol=5e-3, atol=5e-3), \
        f"tight(B=40) max abs err = {float(jnp.max(jnp.abs(out2 - tight2)))}"
    full2 = _reference_f32(ref_embs2, params, gst_heads=gst_heads)
    assert jnp.allclose(out2, full2, rtol=5e-2, atol=5e-2), \
        f"f32(B=40) max abs err = {float(jnp.max(jnp.abs(out2 - full2)))}"

    print("KERNEL_OK")
</pallas_src>

<mosaic_0001>
module attributes {stable_mosaic.version = 11 : i64} {
  func.func @_gst_kernel(%arg0: i32, %arg1: memref<16x128xbf16, #tpu.memory_space<vmem>>, %arg2: memref<128x128xbf16, #tpu.memory_space<vmem>>, %arg3: memref<128x256xbf16, #tpu.memory_space<vmem>>, %arg4: memref<256x256xbf16, #tpu.memory_space<vmem>>, %arg5: memref<128x128xf32, #tpu.memory_space<vmem>>, %arg6: memref<2x256xf32, #tpu.memory_space<vmem>>, %arg7: memref<16x256xf32, #tpu.memory_space<vmem>>) attributes {dimension_semantics = [#tpu.dimension_semantics<parallel>], iteration_bounds = array<i64: 1>, scalar_prefetch = 0 : i64, scratch_operands = 0 : i64, tpu.core_type = #tpu.core_type<tc>, window_params = [{transform_indices = @transform_0, window_bounds = array<i64: 16, 128>}, {pipeline_mode = #tpu.pipeline_mode<synchronous>, transform_indices = @transform_1, window_bounds = array<i64: 128, 128>}, {pipeline_mode = #tpu.pipeline_mode<synchronous>, transform_indices = @transform_2, window_bounds = array<i64: 128, 256>}, {pipeline_mode = #tpu.pipeline_mode<synchronous>, transform_indices = @transform_3, window_bounds = array<i64: 256, 256>}, {pipeline_mode = #tpu.pipeline_mode<synchronous>, transform_indices = @transform_4, window_bounds = array<i64: 128, 128>}, {pipeline_mode = #tpu.pipeline_mode<synchronous>, transform_indices = @transform_5, window_bounds = array<i64: 2, 256>}, {transform_indices = @transform_6, window_bounds = array<i64: 16, 256>}]} {
    %c0 = arith.constant 0 : index
    %c0_0 = arith.constant 0 : index
    %0 = vector.load %arg6[%c0, %c0_0] : memref<2x256xf32, #tpu.memory_space<vmem>>, vector<1x128xf32>
    %c1 = arith.constant 1 : index
    %c0_1 = arith.constant 0 : index
    %1 = vector.load %arg6[%c1, %c0_1] : memref<2x256xf32, #tpu.memory_space<vmem>>, vector<1x256xf32>
    %c0_2 = arith.constant 0 : index
    %c0_3 = arith.constant 0 : index
    %2 = vector.load %arg1[%c0_2, %c0_3] : memref<16x128xbf16, #tpu.memory_space<vmem>>, vector<16x128xbf16>
    %c0_4 = arith.constant 0 : index
    %c0_5 = arith.constant 0 : index
    %3 = vector.load %arg2[%c0_4, %c0_5] : memref<128x128xbf16, #tpu.memory_space<vmem>>, vector<128x128xbf16>
    %cst = arith.constant dense<0.000000e+00> : vector<16x128xf32>
    %4 = tpu.matmul %2, %3, %cst {dimension_numbers = #tpu.dot_dimension_numbers<[1], [0], [0], [1], [0, 0, 1, 1], [], []>} : vector<16x128xbf16>, vector<128x128xbf16>, vector<16x128xf32> -> vector<16x128xf32>
    %5 = vector.broadcast %0 : vector<1x128xf32> to vector<16x128xf32>
    %6 = arith.addf %4, %5 : vector<16x128xf32>
    %cst_6 = arith.constant dense<0xFF800000> : vector<16xf32>
    %7 = vector.multi_reduction <maximumf>, %6, %cst_6 [1] : vector<16x128xf32> to vector<16xf32>
    %8 = vector.shape_cast %7 : vector<16xf32> to vector<16x1xf32>
    %9 = vector.broadcast %8 : vector<16x1xf32> to vector<16x128xf32>
    %10 = arith.subf %6, %9 : vector<16x128xf32>
    %11 = math.exp %10 : vector<16x128xf32>
    %c0_7 = arith.constant 0 : index
    %c0_8 = arith.constant 0 : index
    %12 = vector.load %arg5[%c0_7, %c0_8] : memref<128x128xf32, #tpu.memory_space<vmem>>, vector<128x128xf32>
    %cst_9 = arith.constant dense<0.000000e+00> : vector<16x128xf32>
    %13 = tpu.matmul %11, %12, %cst_9 {dimension_numbers = #tpu.dot_dimension_numbers<[1], [0], [0], [1], [0, 0, 1, 1], [], []>} : vector<16x128xf32>, vector<128x128xf32>, vector<16x128xf32> -> vector<16x128xf32>
    %cst_10 = arith.constant 1.000000e-30 : f32
    %14 = vector.broadcast %cst_10 : f32 to vector<16x128xf32>
    %15 = arith.maximumf %13, %14 : vector<16x128xf32>
    %16 = tpu.reciprocal %15 {approx = true} : vector<16x128xf32> -> vector<16x128xf32>
    %17 = arith.mulf %11, %16 : vector<16x128xf32>
    %18 = arith.truncf %17 : vector<16x128xf32> to vector<16x128xbf16>
    %c0_11 = arith.constant 0 : index
    %c0_12 = arith.constant 0 : index
    %19 = vector.load %arg3[%c0_11, %c0_12] : memref<128x256xbf16, #tpu.memory_space<vmem>>, vector<128x256xbf16>
    %cst_13 = arith.constant dense<0.000000e+00> : vector<16x256xf32>
    %20 = tpu.matmul %18, %19, %cst_13 {dimension_numbers = #tpu.dot_dimension_numbers<[1], [0], [0], [1], [0, 0, 1, 1], [], []>} : vector<16x128xbf16>, vector<128x256xbf16>, vector<16x256xf32> -> vector<16x256xf32>
    %21 = arith.truncf %20 : vector<16x256xf32> to vector<16x256xbf16>
    %c0_14 = arith.constant 0 : index
    %c0_15 = arith.constant 0 : index
    %22 = vector.load %arg4[%c0_14, %c0_15] : memref<256x256xbf16, #tpu.memory_space<vmem>>, vector<256x256xbf16>
    %cst_16 = arith.constant dense<0.000000e+00> : vector<16x256xf32>
    %23 = tpu.matmul %21, %22, %cst_16 {dimension_numbers = #tpu.dot_dimension_numbers<[1], [0], [0], [1], [0, 0, 1, 1], [], []>} : vector<16x256xbf16>, vector<256x256xbf16>, vector<16x256xf32> -> vector<16x256xf32>
    %24 = vector.broadcast %1 : vector<1x256xf32> to vector<16x256xf32>
    %25 = arith.addf %23, %24 : vector<16x256xf32>
    %c0_17 = arith.constant 0 : index
    %c0_18 = arith.constant 0 : index
    %26 = vector.load %arg7[%c0_17, %c0_18] : memref<16x256xf32, #tpu.memory_space<vmem>>, vector<16x256xf32>
    tpu.vector_store %arg7[%c0_17, %c0_18], %25 {strides = array<i32>} : memref<16x256xf32, #tpu.memory_space<vmem>>, vector<16x256xf32>,
    return
  }
  func.func @transform_0(%arg0: i32) -> (i32, i32) {
    %c0_i32 = arith.constant 0 : i32
    %c0_i32_0 = arith.constant 0 : i32
    return %arg0, %c0_i32 : i32, i32
  }
  func.func @transform_1(%arg0: i32) -> (i32, i32) {
    %c0_i32 = arith.constant 0 : i32
    %c0_i32_0 = arith.constant 0 : i32
    %c0_i32_1 = arith.constant 0 : i32
    return %c0_i32, %c0_i32_0 : i32, i32
  }
  func.func @transform_2(%arg0: i32) -> (i32, i32) {
    %c0_i32 = arith.constant 0 : i32
    %c0_i32_0 = arith.constant 0 : i32
    %c0_i32_1 = arith.constant 0 : i32
    return %c0_i32, %c0_i32_0 : i32, i32
  }
  func.func @transform_3(%arg0: i32) -> (i32, i32) {
    %c0_i32 = arith.constant 0 : i32
    %c0_i32_0 = arith.constant 0 : i32
    %c0_i32_1 = arith.constant 0 : i32
    return %c0_i32, %c0_i32_0 : i32, i32
  }
  func.func @transform_4(%arg0: i32) -> (i32, i32) {
    %c0_i32 = arith.constant 0 : i32
    %c0_i32_0 = arith.constant 0 : i32
    %c0_i32_1 = arith.constant 0 : i32
    return %c0_i32, %c0_i32_0 : i32, i32
  }
  func.func @transform_5(%arg0: i32) -> (i32, i32) {
    %c0_i32 = arith.constant 0 : i32
    %c0_i32_0 = arith.constant 0 : i32
    %c0_i32_1 = arith.constant 0 : i32
    return %c0_i32, %c0_i32_0 : i32, i32
  }
  func.func @transform_6(%arg0: i32) -> (i32, i32) {
    %c0_i32 = arith.constant 0 : i32
    %c0_i32_0 = arith.constant 0 : i32
    return %arg0, %c0_i32 : i32, i32
  }
}

</mosaic_0001>

<llo_original>
// kernel: tpu_custom_call.1
$region0: #{tpu_custom_call.1}
  #allocation0 [shape = 'u32[]', space=smem, size = 0x4, offset = 0x4, fixed_abs, tag = 'smem constant byte address 0x4 - core index']
  #allocation1 [shape = 'u32[144,128]{1,0:T(1,128)}', space=vmem, size = 0x12000, scoped, tag = 'internal scratch']
  %s0 = inlined_call_operand.hbm [shape: bf16[16,128], index: 0, kind: input, shape index: {}]
  %s1 = inlined_call_operand.hbm [shape: bf16[128,128], index: 1, kind: input, shape index: {}]
  %s2 = inlined_call_operand.hbm [shape: bf16[128,256], index: 2, kind: input, shape index: {}]
  %s3 = inlined_call_operand.hbm [shape: bf16[256,256], index: 3, kind: input, shape index: {}]
  %s4 = inlined_call_operand.hbm [shape: f32[128,128], index: 4, kind: input, shape index: {}]
  %s5 = inlined_call_operand.vmem [shape: f32[2,256], index: 5, kind: input, shape index: {}]
  %s6 = inlined_call_operand.hbm [shape: f32[16,256], index: 6, kind: output, shape index: {}]
  %s7 = sld [smem:[#allocation0]]
  $region54: #{tpu_custom_call.1} parent=0
    _
  %s9 = ssub.s32 1, %s7
  %s10 = scalar_select 0, %s9, %s7
  $region1: #{tpu_custom_call.1} parent=0
    #allocation2 [shape = 'u8[4096]{0}', space=vmem, size = 0x1000, scoped, tag = 'input window, operand 0, single buffered']
    #allocation3 [shape = 's32[1]{0}', space=sflag, size = 0x4, scoped, tag = 'scoped memory for tpu_custom_call.1']
    #allocation4 [shape = 's32[1]{0}', space=sflag, size = 0x4, scoped, tag = 'scoped memory for tpu_custom_call.1']
    #allocation5 [shape = 'u8[32768]{0}', space=vmem, size = 0x8000, scoped, tag = 'input window, operand 1, single buffered']
    #allocation6 [shape = 's32[1]{0}', space=sflag, size = 0x4, scoped, tag = 'scoped memory for tpu_custom_call.1']
    #allocation7 [shape = 'u8[65536]{0}', space=vmem, size = 0x10000, scoped, tag = 'input window, operand 2, single buffered']
    #allocation8 [shape = 'u8[131072]{0}', space=vmem, size = 0x20000, scoped, tag = 'input window, operand 3, single buffered']
    #allocation9 [shape = 's32[1]{0}', space=sflag, size = 0x4, scoped, tag = 'scoped memory for tpu_custom_call.1']
    #allocation10 [shape = 'u8[65536]{0}', space=vmem, size = 0x10000, scoped, tag = 'input window, operand 4, single buffered']
    #allocation11 [shape = 'u8[16384]{0}', space=vmem, size = 0x4000, scoped, tag = 'output window, operand 0, single buffered']
    %11 = vsyncpa [#allocation3], 0
    %12 = vsyncpa [#allocation6], 0
    %13 = vsyncpa [#allocation9], 0
    %14 = vsyncpa [#allocation4], 0
    // Predicated region
    $region2: #{tpu_custom_call.1} parent=1 // pred_check
      _
    $region3: #{tpu_custom_call.1} parent=1 // pred_check_branch
      %16 = sbr.rel (0) target = $region5
    $region4: #{tpu_custom_call.1} parent=1 // pred_region
      %s18 = ssub.s32 128, 128
      %19 = vsyncadd [#allocation3], %s18
      %s20 = sshll.u32 [#allocation2], 4
      %s21 = int_to_ptr.vmem [resolvable:$true] %s20
      %26 = dma.hbm_to_vmem [thread:$0]  %s0, 128, %s21, [#allocation3], 64, 64, 4
    $region5: #{tpu_custom_call.1} parent=1 // pred_fallthru
      _
    // Predicated region
    $region6: #{tpu_custom_call.1} parent=1 // pred_check
      _
    $region7: #{tpu_custom_call.1} parent=1 // pred_check_branch
      %28 = sbr.rel (0) target = $region9
    $region8: #{tpu_custom_call.1} parent=1 // pred_region
      %s30 = ssub.s32 1024, 1024
      %31 = vsyncadd [#allocation6], %s30
      %s32 = sshll.u32 [#allocation5], 4
      %s33 = int_to_ptr.vmem [resolvable:$true] %s32
      %38 = dma.hbm_to_vmem [thread:$0]  %s1, 1024, %s33, [#allocation6], 64, 64, 4
    $region9: #{tpu_custom_call.1} parent=1 // pred_fallthru
      _
    // Predicated region
    $region10: #{tpu_custom_call.1} parent=1 // pred_check
      _
    $region11: #{tpu_custom_call.1} parent=1 // pred_check_branch
      %40 = sbr.rel (0) target = $region13
    $region12: #{tpu_custom_call.1} parent=1 // pred_region
      %s42 = ssub.s32 2048, 2048
      %43 = vsyncadd [#allocation6], %s42
      %s44 = sshll.u32 [#allocation7], 4
      %s45 = int_to_ptr.vmem [resolvable:$true] %s44
      %50 = dma.hbm_to_vmem [thread:$0]  %s2, 2048, %s45, [#allocation6], 128, 128, 8
    $region13: #{tpu_custom_call.1} parent=1 // pred_fallthru
      _
    // Predicated region
    $region14: #{tpu_custom_call.1} parent=1 // pred_check
      _
    $region15: #{tpu_custom_call.1} parent=1 // pred_check_branch
      %52 = sbr.rel (0) target = $region17
    $region16: #{tpu_custom_call.1} parent=1 // pred_region
      %s54 = ssub.s32 4096, 4096
      %55 = vsyncadd [#allocation9], %s54
      %s56 = sshll.u32 [#allocation8], 4
      %s57 = int_to_ptr.vmem [resolvable:$true] %s56
      %62 = dma.hbm_to_vmem [thread:$0]  %s3, 4096, %s57, [#allocation9], 128, 128, 8
    $region17: #{tpu_custom_call.1} parent=1 // pred_fallthru
      _
    // Predicated region
    $region18: #{tpu_custom_call.1} parent=1 // pred_check
      _
    $region19: #{tpu_custom_call.1} parent=1 // pred_check_branch
      %64 = sbr.rel (0) target = $region21
    $region20: #{tpu_custom_call.1} parent=1 // pred_region
      %s66 = ssub.s32 2048, 2048
      %67 = vsyncadd [#allocation9], %s66
      %s68 = sshll.u32 [#allocation10], 4
      %s69 = int_to_ptr.vmem [resolvable:$true] %s68
      %74 = dma.hbm_to_vmem [thread:$0]  %s4, 2048, %s69, [#allocation9], 128, 128, 8
    $region21: #{tpu_custom_call.1} parent=1 // pred_fallthru
      _
    // Predicated region
    $region22: #{tpu_custom_call.1} parent=1 // pred_check
      _
    $region23: #{tpu_custom_call.1} parent=1 // pred_check_branch
      %76 = sbr.rel (0) target = $region25
    $region24: #{tpu_custom_call.1} parent=1 // pred_region
      _
    $region25: #{tpu_custom_call.1} parent=1 // pred_fallthru
      _
    // Predicated region
    $region26: #{tpu_custom_call.1} parent=1 // pred_check
      _
    $region27: #{tpu_custom_call.1} parent=1 // pred_check_branch
      %78 = sbr.rel (0) target = $region29
    $region28: #{tpu_custom_call.1} parent=1 // pred_region
      %79 = dma.done [#allocation3], 128
    $region29: #{tpu_custom_call.1} parent=1 // pred_fallthru
      _
    // Predicated region
    $region30: #{tpu_custom_call.1} parent=1 // pred_check
      _
    $region31: #{tpu_custom_call.1} parent=1 // pred_check_branch
      %81 = sbr.rel (0) target = $region33
    $region32: #{tpu_custom_call.1} parent=1 // pred_region
      %82 = dma.done [#allocation6], 1024
    $region33: #{tpu_custom_call.1} parent=1 // pred_fallthru
      _
    // Predicated region
    $region34: #{tpu_custom_call.1} parent=1 // pred_check
      _
    $region35: #{tpu_custom_call.1} parent=1 // pred_check_branch
      %84 = sbr.rel (0) target = $region37
    $region36: #{tpu_custom_call.1} parent=1 // pred_region
      %85 = dma.done [#allocation6], 2048
    $region37: #{tpu_custom_call.1} parent=1 // pred_fallthru
      _
    // Predicated region
    $region38: #{tpu_custom_call.1} parent=1 // pred_check
      _
    $region39: #{tpu_custom_call.1} parent=1 // pred_check_branch
      %87 = sbr.rel (0) target = $region41
    $region40: #{tpu_custom_call.1} parent=1 // pred_region
      %88 = dma.done [#allocation9], 4096
    $region41: #{tpu_custom_call.1} parent=1 // pred_fallthru
      _
    // Predicated region
    $region42: #{tpu_custom_call.1} parent=1 // pred_check
      _
    $region43: #{tpu_custom_call.1} parent=1 // pred_check_branch
      %90 = sbr.rel (0) target = $region45
    $region44: #{tpu_custom_call.1} parent=1 // pred_region
      %91 = dma.done [#allocation9], 2048
    $region45: #{tpu_custom_call.1} parent=1 // pred_fallthru
      _
    %v93 = vld [vmem:[%s5] sm:$0x1]
    %s94 = scalar_lea.vmem %s5, 1
    %v95 = vld [vmem:[%s94] ss:$2 sm:$0x3]
    %v96 = vld [vmem:[#allocation2] sm:$0xf]
    %v97 = vld [vmem:[#allocation2 + $0x4] sm:$0xf]
    %v98 = vld [vmem:[#allocation5] sm:$0xf]
    %v99 = vld [vmem:[#allocation5 + $0x4] sm:$0xf]
    %v100 = vld [vmem:[#allocation5 + $0x8] sm:$0xf]
    %v101 = vld [vmem:[#allocation5 + $0xc] sm:$0xf]
    %v102 = vld [vmem:[#allocation5 + $0x10] sm:$0xf]
    %v103 = vld [vmem:[#allocation5 + $0x14] sm:$0xf]
    %v104 = vld [vmem:[#allocation5 + $0x18] sm:$0xf]
    %v105 = vld [vmem:[#allocation5 + $0x1c] sm:$0xf]
    %v106 = vld [vmem:[#allocation5 + $0x20] sm:$0xf]
    %v107 = vld [vmem:[#allocation5 + $0x24] sm:$0xf]
    %v108 = vld [vmem:[#allocation5 + $0x28] sm:$0xf]
    %v109 = vld [vmem:[#allocation5 + $0x2c] sm:$0xf]
    %v110 = vld [vmem:[#allocation5 + $0x30] sm:$0xf]
    %v111 = vld [vmem:[#allocation5 + $0x34] sm:$0xf]
    %v112 = vld [vmem:[#allocation5 + $0x38] sm:$0xf]
    %v113 = vld [vmem:[#allocation5 + $0x3c] sm:$0xf]
    %v114 = vlaneseq
    %v115 = vshrl.u32 %v114, 7
    %v116 = vsub.s32 0, %v115
    %v117 = vrot.slane %v93, %v116
    %v120 = vunpack.c.l.b16 %v96
    %v121 = vunpack.c.l.b16 %v97
    %v122 = vpack.c.b16 %v121, %v120
    %v140 = vunpack.c.l.b16 %v98
    %v141 = vunpack.c.l.b16 %v99
    %v142 = vunpack.c.l.b16 %v100
    %v143 = vunpack.c.l.b16 %v101
    %v144 = vunpack.c.l.b16 %v102
    %v145 = vunpack.c.l.b16 %v103
    %v146 = vunpack.c.l.b16 %v104
    %v147 = vunpack.c.l.b16 %v105
    %v148 = vunpack.c.l.b16 %v106
    %v149 = vunpack.c.l.b16 %v107
    %v150 = vunpack.c.l.b16 %v108
    %v151 = vunpack.c.l.b16 %v109
    %v152 = vunpack.c.l.b16 %v110
    %v153 = vunpack.c.l.b16 %v111
    %v154 = vunpack.c.l.b16 %v112
    %v155 = vunpack.c.l.b16 %v113
    %v156 = vpack.c.b16 %v141, %v140
    %v157 = vpack.c.b16 %v143, %v142
    %v158 = vpack.c.b16 %v145, %v144
    %v159 = vpack.c.b16 %v147, %v146
    %v160 = vpack.c.b16 %v149, %v148
    %v161 = vpack.c.b16 %v151, %v150
    %v162 = vpack.c.b16 %v153, %v152
    %v163 = vpack.c.b16 %v155, %v154
    %172 = vmatprep.subr.bf16.mxu0 0
    %173 = vmatpush1.bf16.msra.mxu0 %v156
    %174 = vmatprep.subr.bf16.mxu0 0
    %175 = vmatpush1.bf16.msra.mxu0 %v157
    %176 = vmatprep.subr.bf16.mxu0 0
    %177 = vmatpush1.bf16.msra.mxu0 %v158
    %178 = vmatprep.subr.bf16.mxu0 0
    %179 = vmatpush1.bf16.msra.mxu0 %v159
    %180 = vmatprep.subr.bf16.mxu0 0
    %181 = vmatpush1.bf16.msra.mxu0 %v160
    %182 = vmatprep.subr.bf16.mxu0 0
    %183 = vmatpush1.bf16.msra.mxu0 %v161
    %184 = vmatprep.subr.bf16.mxu0 0
    %185 = vmatpush1.bf16.msra.mxu0 %v162
    %186 = vmatprep.subr.bf16.mxu0 0
    %187 = vmatpush1.bf16.msra.mxu0 %v163
    %188 = vmatprep.subr.bf16.mxu0 0
    %189 = vmatpush1.bf16.msra.mxu0 0
    %190 = vmatprep.subr.bf16.mxu0 0
    %191 = vmatpush1.bf16.msra.mxu0 0
    %192 = vmatprep.subr.bf16.mxu0 0
    %193 = vmatpush1.bf16.msra.mxu0 0
    %194 = vmatprep.subr.bf16.mxu0 0
    %195 = vmatpush1.bf16.msra.mxu0 0
    %196 = vmatprep.subr.bf16.mxu0 0
    %197 = vmatpush1.bf16.msra.mxu0 0
    %198 = vmatprep.subr.bf16.mxu0 0
    %199 = vmatpush1.bf16.msra.mxu0 0
    %200 = vmatprep.subr.bf16.mxu0 0
    %201 = vmatpush1.bf16.msra.mxu0 0
    %202 = vmatprep.subr.bf16.mxu0 0
    %203 = vmatpush1.bf16.msra.mxu0 0
    %204 = vmatprep.mubr.bf16.mxu0 0
    %205 = vmatmul.mubr.bf16.gmra.mrb[0].mxu0 %v122
    %v206 = vpop.f32.mrb[0].mxu0
    %v207 = vadd.f32 %v117, %v206
    %v208 = vpop.f32.mrb[0].mxu0
    %v209 = vpop.f32.mrb[0].mxu0
    %v210 = vadd.f32 %v117, %v209
    %v211 = vpop.f32.mrb[0].mxu0
    %212 = vdwg.mxu0
    %213 = vmax.xlane.f32.xlu0 %v207
    %v214 = vpop.xlane.xlu0 %213
    %215 = vmax.xlane.f32.xlu0 %v210
    %v216 = vpop.xlane.xlu0 %215
    %v217 = vsub.f32 %v207, %v214
    %v218 = vsub.f32 %v210, %v216
    %v219 = vmul.f32 %v217, 1.442695
    %v220 = vpow.pop %v219
    %v221 = vmul.f32 %v218, 1.442695
    %v222 = vpow.pop %v221
    %v223 = vld [vmem:[#allocation10] sm:$0xff]
    %v224 = vld [vmem:[#allocation10 + $0x8] sm:$0xff]
    %v225 = vld [vmem:[#allocation10 + $0x10] sm:$0xff]
    %v226 = vld [vmem:[#allocation10 + $0x18] sm:$0xff]
    %v227 = vld [vmem:[#allocation10 + $0x20] sm:$0xff]
    %v228 = vld [vmem:[#allocation10 + $0x28] sm:$0xff]
    %v229 = vld [vmem:[#allocation10 + $0x30] sm:$0xff]
    %v230 = vld [vmem:[#allocation10 + $0x38] sm:$0xff]
    %v231 = vld [vmem:[#allocation10 + $0x40] sm:$0xff]
    %v232 = vld [vmem:[#allocation10 + $0x48] sm:$0xff]
    %v233 = vld [vmem:[#allocation10 + $0x50] sm:$0xff]
    %v234 = vld [vmem:[#allocation10 + $0x58] sm:$0xff]
    %v235 = vld [vmem:[#allocation10 + $0x60] sm:$0xff]
    %v236 = vld [vmem:[#allocation10 + $0x68] sm:$0xff]
    %v237 = vld [vmem:[#allocation10 + $0x70] sm:$0xff]
    %v238 = vld [vmem:[#allocation10 + $0x78] sm:$0xff]
    %239 = vmatprep.subr.mxu0 0.0
    %240 = vmatpush1.msra.mxu0 %v223
    %241 = vmatprep.subr.mxu0 0.0
    %242 = vmatpush1.msra.mxu0 %v224
    %243 = vmatprep.subr.mxu0 0.0
    %244 = vmatpush1.msra.mxu0 %v225
    %245 = vmatprep.subr.mxu0 0.0
    %246 = vmatpush1.msra.mxu0 %v226
    %247 = vmatprep.subr.mxu0 0.0
    %248 = vmatpush1.msra.mxu0 %v227
    %249 = vmatprep.subr.mxu0 0.0
    %250 = vmatpush1.msra.mxu0 %v228
    %251 = vmatprep.subr.mxu0 0.0
    %252 = vmatpush1.msra.mxu0 %v229
    %253 = vmatprep.subr.mxu0 0.0
    %254 = vmatpush1.msra.mxu0 %v230
    %255 = vmatprep.subr.mxu0 0.0
    %256 = vmatpush1.msra.mxu0 %v231
    %257 = vmatprep.subr.mxu0 0.0
    %258 = vmatpush1.msra.mxu0 %v232
    %259 = vmatprep.subr.mxu0 0.0
    %260 = vmatpush1.msra.mxu0 %v233
    %261 = vmatprep.subr.mxu0 0.0
    %262 = vmatpush1.msra.mxu0 %v234
    %263 = vmatprep.subr.mxu0 0.0
    %264 = vmatpush1.msra.mxu0 %v235
    %265 = vmatprep.subr.mxu0 0.0
    %266 = vmatpush1.msra.mxu0 %v236
    %267 = vmatprep.subr.mxu0 0.0
    %268 = vmatpush1.msra.mxu0 %v237
    %269 = vmatprep.subr.mxu0 0.0
    %270 = vmatpush1.msra.mxu0 %v238
    %271 = vmatprep.subr.mxu0 0.0
    %272 = vmatpush1.msra.mxu0 0.0
    %273 = vmatprep.subr.mxu0 0.0
    %274 = vmatpush1.msra.mxu0 0.0
    %275 = vmatprep.subr.mxu0 0.0
    %276 = vmatpush1.msra.mxu0 0.0
    %277 = vmatprep.subr.mxu0 0.0
    %278 = vmatpush1.msra.mxu0 0.0
    %279 = vmatprep.subr.mxu0 0.0
    %280 = vmatpush1.msra.mxu0 0.0
    %281 = vmatprep.subr.mxu0 0.0
    %282 = vmatpush1.msra.mxu0 0.0
    %283 = vmatprep.subr.mxu0 0.0
    %284 = vmatpush1.msra.mxu0 0.0
    %285 = vmatprep.subr.mxu0 0.0
    %286 = vmatpush1.msra.mxu0 0.0
    %287 = vmatprep.subr.mxu0 0.0
    %288 = vmatpush1.msra.mxu0 0.0
    %289 = vmatprep.subr.mxu0 0.0
    %290 = vmatpush1.msra.mxu0 0.0
    %291 = vmatprep.subr.mxu0 0.0
    %292 = vmatpush1.msra.mxu0 0.0
    %293 = vmatprep.subr.mxu0 0.0
    %294 = vmatpush1.msra.mxu0 0.0
    %295 = vmatprep.subr.mxu0 0.0
    %296 = vmatpush1.msra.mxu0 0.0
    %297 = vmatprep.subr.mxu0 0.0
    %298 = vmatpush1.msra.mxu0 0.0
    %299 = vmatprep.subr.mxu0 0.0
    %300 = vmatpush1.msra.mxu0 0.0
    %301 = vmatprep.subr.mxu0 0.0
    %302 = vmatpush1.msra.mxu0 0.0
    %303 = vmatprep.mubr.f32.mxu0 0.0
    %304 = vmatmul.mubr.f32.gmra.mrb[0].mxu0 %v220
    %v305 = vpop.f32.mrb[0].mxu0
    %v306 = vadd.f32 0.0, %v305
    %v307 = vpop.f32.mrb[0].mxu0
    %308 = vmatprep.mubr.f32.mxu0 0.0
    %309 = vmatmul.mubr.f32.gmra.mrb[0].mxu0 %v222
    %v310 = vpop.f32.mrb[0].mxu0
    %v311 = vadd.f32 0.0, %v310
    %v312 = vpop.f32.mrb[0].mxu0
    %313 = vdwg.mxu0
    %v314 = vmax.f32 %v306, 1e-30
    %v315 = vmax.f32 %v311, 1e-30
    %v316 = vrcp.pop %v314
    %v317 = vrcp.pop %v315
    %v318 = vmul.f32 %v220, %v316
    %v319 = vmul.f32 %v222, %v317
    %v320 = vpack.c.bf16 %v319, %v318
    %v321 = vld [vmem:[#allocation7] sm:$0xff]
    %v322 = vld [vmem:[#allocation7 + $0x8] sm:$0xff]
    %v323 = vld [vmem:[#allocation7 + $0x10] sm:$0xff]
    %v324 = vld [vmem:[#allocation7 + $0x18] sm:$0xff]
    %v325 = vld [vmem:[#allocation7 + $0x20] sm:$0xff]
    %v326 = vld [vmem:[#allocation7 + $0x28] sm:$0xff]
    %v327 = vld [vmem:[#allocation7 + $0x30] sm:$0xff]
    %v328 = vld [vmem:[#allocation7 + $0x38] sm:$0xff]
    %v329 = vld [vmem:[#allocation7 + $0x40] sm:$0xff]
    %v330 = vld [vmem:[#allocation7 + $0x48] sm:$0xff]
    %v331 = vld [vmem:[#allocation7 + $0x50] sm:$0xff]
    %v332 = vld [vmem:[#allocation7 + $0x58] sm:$0xff]
    %v333 = vld [vmem:[#allocation7 + $0x60] sm:$0xff]
    %v334 = vld [vmem:[#allocation7 + $0x68] sm:$0xff]
    %v335 = vld [vmem:[#allocation7 + $0x70] sm:$0xff]
    %v336 = vld [vmem:[#allocation7 + $0x78] sm:$0xff]
    %v353 = vunpack.c.l.b16 %v321
    %v354 = vunpack.c.h.b16 %v321
    %v355 = vunpack.c.l.b16 %v322
    %v356 = vunpack.c.h.b16 %v322
    %v357 = vunpack.c.l.b16 %v323
    %v358 = vunpack.c.h.b16 %v323
    %v359 = vunpack.c.l.b16 %v324
    %v360 = vunpack.c.h.b16 %v324
    %v361 = vunpack.c.l.b16 %v325
    %v362 = vunpack.c.h.b16 %v325
    %v363 = vunpack.c.l.b16 %v326
    %v364 = vunpack.c.h.b16 %v326
    %v365 = vunpack.c.l.b16 %v327
    %v366 = vunpack.c.h.b16 %v327
    %v367 = vunpack.c.l.b16 %v328
    %v368 = vunpack.c.h.b16 %v328
    %v369 = vunpack.c.l.b16 %v329
    %v370 = vunpack.c.h.b16 %v329
    %v371 = vunpack.c.l.b16 %v330
    %v372 = vunpack.c.h.b16 %v330
    %v373 = vunpack.c.l.b16 %v331
    %v374 = vunpack.c.h.b16 %v331
    %v375 = vunpack.c.l.b16 %v332
    %v376 = vunpack.c.h.b16 %v332
    %v377 = vunpack.c.l.b16 %v333
    %v378 = vunpack.c.h.b16 %v333
    %v379 = vunpack.c.l.b16 %v334
    %v380 = vunpack.c.h.b16 %v334
    %v381 = vunpack.c.l.b16 %v335
    %v382 = vunpack.c.h.b16 %v335
    %v383 = vunpack.c.l.b16 %v336
    %v384 = vunpack.c.h.b16 %v336
    %v385 = vpack.c.b16 %v355, %v353
    %v386 = vpack.c.b16 %v356, %v354
    %v387 = vpack.c.b16 %v359, %v357
    %v388 = vpack.c.b16 %v360, %v358
    %v389 = vpack.c.b16 %v363, %v361
    %v390 = vpack.c.b16 %v364, %v362
    %v391 = vpack.c.b16 %v367, %v365
    %v392 = vpack.c.b16 %v368, %v366
    %v393 = vpack.c.b16 %v371, %v369
    %v394 = vpack.c.b16 %v372, %v370
    %v395 = vpack.c.b16 %v375, %v373
    %v396 = vpack.c.b16 %v376, %v374
    %v397 = vpack.c.b16 %v379, %v377
    %v398 = vpack.c.b16 %v380, %v378
    %v399 = vpack.c.b16 %v383, %v381
    %v400 = vpack.c.b16 %v384, %v382
    %417 = vmatprep.subr.bf16.mxu0 %v386
    %418 = vmatpush1.bf16.msra.mxu0 %v385
    %419 = vmatprep.subr.bf16.mxu0 %v388
    %420 = vmatpush1.bf16.msra.mxu0 %v387
    %421 = vmatprep.subr.bf16.mxu0 %v390
    %422 = vmatpush1.bf16.msra.mxu0 %v389
    %423 = vmatprep.subr.bf16.mxu0 %v392
    %424 = vmatpush1.bf16.msra.mxu0 %v391
    %425 = vmatprep.subr.bf16.mxu0 %v394
    %426 = vmatpush1.bf16.msra.mxu0 %v393
    %427 = vmatprep.subr.bf16.mxu0 %v396
    %428 = vmatpush1.bf16.msra.mxu0 %v395
    %429 = vmatprep.subr.bf16.mxu0 %v398
    %430 = vmatpush1.bf16.msra.mxu0 %v397
    %431 = vmatprep.subr.bf16.mxu0 %v400
    %432 = vmatpush1.bf16.msra.mxu0 %v399
    %433 = vmatprep.subr.bf16.mxu0 0
    %434 = vmatpush1.bf16.msra.mxu0 0
    %435 = vmatprep.subr.bf16.mxu0 0
    %436 = vmatpush1.bf16.msra.mxu0 0
    %437 = vmatprep.subr.bf16.mxu0 0
    %438 = vmatpush1.bf16.msra.mxu0 0
    %439 = vmatprep.subr.bf16.mxu0 0
    %440 = vmatpush1.bf16.msra.mxu0 0
    %441 = vmatprep.subr.bf16.mxu0 0
    %442 = vmatpush1.bf16.msra.mxu0 0
    %443 = vmatprep.subr.bf16.mxu0 0
    %444 = vmatpush1.bf16.msra.mxu0 0
    %445 = vmatprep.subr.bf16.mxu0 0
    %446 = vmatpush1.bf16.msra.mxu0 0
    %447 = vmatprep.subr.bf16.mxu0 0
    %448 = vmatpush1.bf16.msra.mxu0 0
    %449 = vmatprep.mubr.bf16.mxu0 0
    %450 = vmatmul.mubr.bf16.gmra.mrb[0].mxu0 %v320
    %v451 = vpop.f32.mrb[0].mxu0
    %v452 = vadd.f32 0.0, %v451
    %v453 = vpop.f32.mrb[0].mxu0
    %v454 = vadd.f32 0.0, %v453
    %v455 = vpop.f32.mrb[0].mxu0
    %v456 = vadd.f32 0.0, %v455
    %v457 = vpop.f32.mrb[0].mxu0
    %v458 = vadd.f32 0.0, %v457
    %459 = vdwg.mxu0
    %v460 = vpack.c.bf16 %v456, %v452
    %v461 = vpack.c.bf16 %v458, %v454
    %v462 = vld [vmem:[#allocation8] sm:$0xff]
    %v463 = vld [vmem:[#allocation8 + $0x8] sm:$0xff]
    %v464 = vld [vmem:[#allocation8 + $0x10] sm:$0xff]
    %v465 = vld [vmem:[#allocation8 + $0x18] sm:$0xff]
    %v466 = vld [vmem:[#allocation8 + $0x20] sm:$0xff]
    %v467 = vld [vmem:[#allocation8 + $0x28] sm:$0xff]
    %v468 = vld [vmem:[#allocation8 + $0x30] sm:$0xff]
    %v469 = vld [vmem:[#allocation8 + $0x38] sm:$0xff]
    %v470 = vld [vmem:[#allocation8 + $0x40] sm:$0xff]
    %v471 = vld [vmem:[#allocation8 + $0x48] sm:$0xff]
    %v472 = vld [vmem:[#allocation8 + $0x50] sm:$0xff]
    %v473 = vld [vmem:[#allocation8 + $0x58] sm:$0xff]
    %v474 = vld [vmem:[#allocation8 + $0x60] sm:$0xff]
    %v475 = vld [vmem:[#allocation8 + $0x68] sm:$0xff]
    %v476 = vld [vmem:[#allocation8 + $0x70] sm:$0xff]
    %v477 = vld [vmem:[#allocation8 + $0x78] sm:$0xff]
    %v478 = vld [vmem:[#allocation8 + $0x80] sm:$0xff]
    %v479 = vld [vmem:[#allocation8 + $0x88] sm:$0xff]
    %v480 = vld [vmem:[#allocation8 + $0x90] sm:$0xff]
    %v481 = vld [vmem:[#allocation8 + $0x98] sm:$0xff]
    %v482 = vld [vmem:[#allocation8 + $0xa0] sm:$0xff]
    %v483 = vld [vmem:[#allocation8 + $0xa8] sm:$0xff]
    %v484 = vld [vmem:[#allocation8 + $0xb0] sm:$0xff]
    %v485 = vld [vmem:[#allocation8 + $0xb8] sm:$0xff]
    %v486 = vld [vmem:[#allocation8 + $0xc0] sm:$0xff]
    %v487 = vld [vmem:[#allocation8 + $0xc8] sm:$0xff]
    %v488 = vld [vmem:[#allocation8 + $0xd0] sm:$0xff]
    %v489 = vld [vmem:[#allocation8 + $0xd8] sm:$0xff]
    %v490 = vld [vmem:[#allocation8 + $0xe0] sm:$0xff]
    %v491 = vld [vmem:[#allocation8 + $0xe8] sm:$0xff]
    %v492 = vld [vmem:[#allocation8 + $0xf0] sm:$0xff]
    %v493 = vld [vmem:[#allocation8 + $0xf8] sm:$0xff]
    %v495 = vlaneseq
    %v496 = vshrl.u32 %v495, 7
    %v497 = vsub.s32 0, %v496
    %v498 = vrot.slane %v95, %v497
    %v499 = vlaneseq
    %v500 = vshrl.u32 %v499, 7
    %v501 = vsub.s32 1, %v500
    %v502 = vrot.slane %v95, %v501
    %v537 = vunpack.c.l.b16 %v462
    %v538 = vunpack.c.h.b16 %v462
    %v539 = vunpack.c.l.b16 %v463
    %v540 = vunpack.c.h.b16 %v463
    %v541 = vunpack.c.l.b16 %v464
    %v542 = vunpack.c.h.b16 %v464
    %v543 = vunpack.c.l.b16 %v465
    %v544 = vunpack.c.h.b16 %v465
    %v545 = vunpack.c.l.b16 %v466
    %v546 = vunpack.c.h.b16 %v466
    %v547 = vunpack.c.l.b16 %v467
    %v548 = vunpack.c.h.b16 %v467
    %v549 = vunpack.c.l.b16 %v468
    %v550 = vunpack.c.h.b16 %v468
    %v551 = vunpack.c.l.b16 %v469
    %v552 = vunpack.c.h.b16 %v469
    %v553 = vunpack.c.l.b16 %v470
    %v554 = vunpack.c.h.b16 %v470
    %v555 = vunpack.c.l.b16 %v471
    %v556 = vunpack.c.h.b16 %v471
    %v557 = vunpack.c.l.b16 %v472
    %v558 = vunpack.c.h.b16 %v472
    %v559 = vunpack.c.l.b16 %v473
    %v560 = vunpack.c.h.b16 %v473
    %v561 = vunpack.c.l.b16 %v474
    %v562 = vunpack.c.h.b16 %v474
    %v563 = vunpack.c.l.b16 %v475
    %v564 = vunpack.c.h.b16 %v475
    %v565 = vunpack.c.l.b16 %v476
    %v566 = vunpack.c.h.b16 %v476
    %v567 = vunpack.c.l.b16 %v477
    %v568 = vunpack.c.h.b16 %v477
    %v569 = vunpack.c.l.b16 %v478
    %v570 = vunpack.c.h.b16 %v478
    %v571 = vunpack.c.l.b16 %v479
    %v572 = vunpack.c.h.b16 %v479
    %v573 = vunpack.c.l.b16 %v480
    %v574 = vunpack.c.h.b16 %v480
    %v575 = vunpack.c.l.b16 %v481
    %v576 = vunpack.c.h.b16 %v481
    %v577 = vunpack.c.l.b16 %v482
    %v578 = vunpack.c.h.b16 %v482
    %v579 = vunpack.c.l.b16 %v483
    %v580 = vunpack.c.h.b16 %v483
    %v581 = vunpack.c.l.b16 %v484
    %v582 = vunpack.c.h.b16 %v484
    %v583 = vunpack.c.l.b16 %v485
    %v584 = vunpack.c.h.b16 %v485
    %v585 = vunpack.c.l.b16 %v486
    %v586 = vunpack.c.h.b16 %v486
    %v587 = vunpack.c.l.b16 %v487
    %v588 = vunpack.c.h.b16 %v487
    %v589 = vunpack.c.l.b16 %v488
    %v590 = vunpack.c.h.b16 %v488
    %v591 = vunpack.c.l.b16 %v489
    %v592 = vunpack.c.h.b16 %v489
    %v593 = vunpack.c.l.b16 %v490
    %v594 = vunpack.c.h.b16 %v490
    %v595 = vunpack.c.l.b16 %v491
    %v596 = vunpack.c.h.b16 %v491
    %v597 = vunpack.c.l.b16 %v492
    %v598 = vunpack.c.h.b16 %v492
    %v599 = vunpack.c.l.b16 %v493
    %v600 = vunpack.c.h.b16 %v493
    %v601 = vpack.c.b16 %v539, %v537
    %v602 = vpack.c.b16 %v540, %v538
    %v603 = vpack.c.b16 %v543, %v541
    %v604 = vpack.c.b16 %v544, %v542
    %v605 = vpack.c.b16 %v547, %v545
    %v606 = vpack.c.b16 %v548, %v546
    %v607 = vpack.c.b16 %v551, %v549
    %v608 = vpack.c.b16 %v552, %v550
    %v609 = vpack.c.b16 %v555, %v553
    %v610 = vpack.c.b16 %v556, %v554
    %v611 = vpack.c.b16 %v559, %v557
    %v612 = vpack.c.b16 %v560, %v558
    %v613 = vpack.c.b16 %v563, %v561
    %v614 = vpack.c.b16 %v564, %v562
    %v615 = vpack.c.b16 %v567, %v565
    %v616 = vpack.c.b16 %v568, %v566
    %v617 = vpack.c.b16 %v571, %v569
    %v618 = vpack.c.b16 %v572, %v570
    %v619 = vpack.c.b16 %v575, %v573
    %v620 = vpack.c.b16 %v576, %v574
    %v621 = vpack.c.b16 %v579, %v577
    %v622 = vpack.c.b16 %v580, %v578
    %v623 = vpack.c.b16 %v583, %v581
    %v624 = vpack.c.b16 %v584, %v582
    %v625 = vpack.c.b16 %v587, %v585
    %v626 = vpack.c.b16 %v588, %v586
    %v627 = vpack.c.b16 %v591, %v589
    %v628 = vpack.c.b16 %v592, %v590
    %v629 = vpack.c.b16 %v595, %v593
    %v630 = vpack.c.b16 %v596, %v594
    %v631 = vpack.c.b16 %v599, %v597
    %v632 = vpack.c.b16 %v600, %v598
    %665 = vmatprep.subr.bf16.mxu0 %v602
    %666 = vmatpush1.bf16.msra.mxu0 %v601
    %667 = vmatprep.subr.bf16.mxu0 %v604
    %668 = vmatpush1.bf16.msra.mxu0 %v603
    %669 = vmatprep.subr.bf16.mxu0 %v606
    %670 = vmatpush1.bf16.msra.mxu0 %v605
    %671 = vmatprep.subr.bf16.mxu0 %v608
    %672 = vmatpush1.bf16.msra.mxu0 %v607
    %673 = vmatprep.subr.bf16.mxu0 %v610
    %674 = vmatpush1.bf16.msra.mxu0 %v609
    %675 = vmatprep.subr.bf16.mxu0 %v612
    %676 = vmatpush1.bf16.msra.mxu0 %v611
    %677 = vmatprep.subr.bf16.mxu0 %v614
    %678 = vmatpush1.bf16.msra.mxu0 %v613
    %679 = vmatprep.subr.bf16.mxu0 %v616
    %680 = vmatpush1.bf16.msra.mxu0 %v615
    %681 = vmatprep.subr.bf16.mxu0 %v618
    %682 = vmatpush1.bf16.msra.mxu0 %v617
    %683 = vmatprep.subr.bf16.mxu0 %v620
    %684 = vmatpush1.bf16.msra.mxu0 %v619
    %685 = vmatprep.subr.bf16.mxu0 %v622
    %686 = vmatpush1.bf16.msra.mxu0 %v621
    %687 = vmatprep.subr.bf16.mxu0 %v624
    %688 = vmatpush1.bf16.msra.mxu0 %v623
    %689 = vmatprep.subr.bf16.mxu0 %v626
    %690 = vmatpush1.bf16.msra.mxu0 %v625
    %691 = vmatprep.subr.bf16.mxu0 %v628
    %692 = vmatpush1.bf16.msra.mxu0 %v627
    %693 = vmatprep.subr.bf16.mxu0 %v630
    %694 = vmatpush1.bf16.msra.mxu0 %v629
    %695 = vmatprep.subr.bf16.mxu0 %v632
    %696 = vmatpush1.bf16.msra.mxu0 %v631
    %697 = vmatprep.mubr.bf16.mxu0 %v461
    %698 = vmatmul.mubr.bf16.gmra.mrb[0].mxu0 %v460
    %v699 = vpop.f32.mrb[0].mxu0
    %v700 = vadd.f32 %v498, %v699
    %v701 = vpop.f32.mrb[0].mxu0
    %v702 = vadd.f32 %v502, %v701
    %v703 = vpop.f32.mrb[0].mxu0
    %v704 = vadd.f32 %v498, %v703
    %v705 = vpop.f32.mrb[0].mxu0
    %v706 = vadd.f32 %v502, %v705
    %707 = vdwg.mxu0
    %708 = vst [vmem:[#allocation11] sm:$0xff] %v700
    %709 = vst [vmem:[#allocation11 + $0x8] sm:$0xff] %v702
    %710 = vst [vmem:[#allocation11 + $0x10] sm:$0xff] %v704
    %711 = vst [vmem:[#allocation11 + $0x18] sm:$0xff] %v706
    // Predicated region
    $region46: #{tpu_custom_call.1} parent=1 // pred_check
      _
    $region47: #{tpu_custom_call.1} parent=1 // pred_check_branch
      %713 = sbr.rel (0) target = $region49
    $region48: #{tpu_custom_call.1} parent=1 // pred_region
      %s715 = ssub.s32 512, 512
      %716 = vsyncadd [#allocation4], %s715
      %s717 = sshll.u32 [#allocation11], 4
      %s718 = int_to_ptr.vmem [resolvable:$true] %s717
      %723 = dma.vmem_to_hbm [thread:$0]  %s718, 512, %s6, [#allocation4], 256, 256, 16
    $region49: #{tpu_custom_call.1} parent=1 // pred_fallthru
      _
    // Predicated region
    $region50: #{tpu_custom_call.1} parent=1 // pred_check
      _
    $region51: #{tpu_custom_call.1} parent=1 // pred_check_branch
      %725 = sbr.rel (0) target = $region53
    $region52: #{tpu_custom_call.1} parent=1 // pred_region
      %726 = dma.done [#allocation4], 512
    $region53: #{tpu_custom_call.1} parent=1 // pred_fallthru
      _
    %727 = vsyncpa [#allocation3], 1
    %728 = vsyncpa [#allocation6], 1
    %729 = vsyncpa [#allocation9], 1
    %730 = vsyncpa [#allocation4], 1

</llo_original>
